<compile_context>
chip_gen: v7x
topology: tpu7x:2x2x1
jax: 0.10.0
libtpu: 0.0.40
codegen_flags: <defaults>
</compile_context>

<pallas_src>
import jax
import jax.numpy as jnp
from jax.experimental import pallas as pl
from jax.experimental.pallas import tpu as pltpu

# ---- small-shape hyperparameters consistent with the module ----------------
VOCAB = 50            # input_size
EMB = 32              # embedding_size (module default 300)
MAX_LEN = 16          # max_len        (module default 70)
NF = 8                # num_filters    (module default 36)
BATCH = 2
KERNEL_SIZES = (1, 2, 3, 5)

N_TAPS = sum(KERNEL_SIZES)           # 11 packed (k, j) weight column blocks
N_BRANCH = len(KERNEL_SIZES) * NF    # 32  = branch-concatenated conv width
N_AGG = 2 * N_BRANCH                 # 64  = linear input width (8 * NF)
MAX_J = max(KERNEL_SIZES) - 1        # 4   = largest tap offset

NSEG = 2 * BATCH                     # (embedding table, batch) segments
M_TOTAL = NSEG * MAX_LEN             # 64  = M dim of the fused matmuls

# packed-parameter layout (single f32 array, lane-dense)
EMB_ROWS = 2 * VOCAB                 # 100 rows: [emb1; emb2]
EMB_ROWS_PAD = 104                   # rounded up to a multiple of 8
W_ROW = EMB_ROWS_PAD                 # conv weights start (8-aligned)
TAIL_ROW = W_ROW + EMB               # 136: bias / linear / etc. rows (8-aligned)
PACK_ROWS = TAIL_ROW + 8             # 144
PACK_COLS = 128


def _cnn_classifier_kernel(ids_ref, params_ref, out_ref):
    """Single-shot forward: ids_ref (B*MAX_LEN, 1) i32, params_ref (144, 128) f32,
    out_ref (B, 1) f32 = sigmoid(linear(concat of 8 max-pooled conv branches))."""

    # ---- 1. fused embedding gather: one-hot @ packed tables (one MXU push) ----
    ids1 = ids_ref[...]                                           # (B*L, 1) i32
    ids_all = jnp.concatenate([ids1, ids1 + VOCAB], axis=0)       # (M, 1): 2nd half -> emb2 rows
    vocab_iota = jax.lax.broadcasted_iota(jnp.int32, (M_TOTAL, EMB_ROWS_PAD), 1)
    onehot = jnp.where(ids_all == vocab_iota, 1.0, 0.0)           # (M, 104) f32, exact
    emb_pack = params_ref[0:EMB_ROWS_PAD, 0:EMB]                  # [emb1; emb2; 0-pad]
    x = jnp.dot(onehot, emb_pack, preferred_element_type=jnp.float32)   # (M, EMB)

    # ---- 2. all 8 conv branches with ONE matmul against packed taps ----------
    w_all = params_ref[W_ROW:W_ROW + EMB, 0:N_TAPS * NF]          # (EMB, 88)
    y = jnp.dot(x, w_all, preferred_element_type=jnp.float32)     # (M, 88)

    tail = params_ref[TAIL_ROW:TAIL_ROW + 8, :]                   # (8, 128)
    bias_all = tail[0:1, 0:N_BRANCH]                              # (1, 32) conv biases
    wl_row = tail[1:2, 0:N_AGG]                                   # (1, 64) linear weight
    bl = tail[2:3, 0:1]                                           # (1, 1)  linear bias

    # ---- 3. tap alignment via sublane rolls (XLU) + roll-consistent masking ---
    pos = jax.lax.broadcasted_iota(jnp.int32, (M_TOTAL, 1), 0) % MAX_LEN
    y_roll = [y]
    p_roll = [pos]
    for j in range(1, MAX_J + 1):
        shift = M_TOTAL - j                                       # == -j (mod M), kept positive
        y_roll.append(pltpu.roll(y, shift=shift, axis=0))
        p_roll.append(pltpu.roll(pos, shift=shift, axis=0))

    branch_acts = []
    off = 0
    for bi, k in enumerate(KERNEL_SIZES):
        acc = y_roll[0][:, off:off + NF]                          # tap j = 0
        valid = None
        for j in range(1, k):
            acc = acc + y_roll[j][:, off + j * NF:off + (j + 1) * NF]
            # a row is valid only if tap j came from the same sequence, j steps away
            dp = p_roll[j] - p_roll[0]                            # (M, 1) i32
            ok = jnp.logical_or(dp == j, dp == -j)
            valid = ok if valid is None else jnp.logical_and(valid, ok)
        act = jnp.tanh(acc + bias_all[:, bi * NF:(bi + 1) * NF])  # (M, NF)
        if valid is not None:
            act = jnp.where(valid, act, -jnp.inf)                 # mask out-of-window rows
        branch_acts.append(act)
        off += k * NF
    conv_cat = jnp.concatenate(branch_acts, axis=1)               # (M, 4*NF)

    # ---- 4. per-(table, batch) max-pool + VPU linear + sigmoid ----------------
    pools = [jnp.max(conv_cat[s * MAX_LEN:(s + 1) * MAX_LEN, :], axis=0, keepdims=True)
             for s in range(NSEG)]                                # NSEG x (1, 32)
    wl1 = wl_row[:, 0:N_BRANCH]                                   # weights for emb1 pools
    wl2 = wl_row[:, N_BRANCH:N_AGG]                               # weights for emb2 pools
    # TODO(synk): nn.Dropout(p=0.1) with train=True needs in-kernel RNG; inference path only.
    for b in range(BATCH):
        logit = jnp.sum(pools[b] * wl1 + pools[BATCH + b] * wl2,
                        axis=1, keepdims=True) + bl               # (1, 1) lane reduce, no MXU
        out_ref[b:b + 1, 0:1] = jax.nn.sigmoid(logit)


@jax.jit
def cnn_classifier_forward(question, packed_params):
    """question: (BATCH, MAX_LEN) int32 token ids; packed_params: (144, 128) f32."""
    ids = question.reshape(BATCH * MAX_LEN, 1).astype(jnp.int32)
    # Grid-less call: whole arrays land in VMEM, single invocation, single output store.
    return pl.pallas_call(
        _cnn_classifier_kernel,
        out_shape=jax.ShapeDtypeStruct((BATCH, 1), jnp.float32),
    )(ids, packed_params)


def init_params(key):
    keys = jax.random.split(key, 11)
    pretrained = 0.05 * jax.random.normal(keys[0], (VOCAB, EMB), jnp.float32)
    emb1 = pretrained                      # embedding1 (frozen copy of pretrained)
    emb2 = pretrained                      # embedding2 (trainable copy, same init)
    conv_w, conv_b = {}, {}
    for i, k in enumerate(KERNEL_SIZES):
        # PyTorch Conv2d weight layout: (NF, 1, k, EMB)
        conv_w[k] = 0.1 * jax.random.normal(keys[1 + i], (NF, 1, k, EMB), jnp.float32)
        conv_b[k] = 0.01 * jax.random.normal(keys[5 + i], (NF,), jnp.float32)
    wl = 0.1 * jax.random.normal(keys[9], (1, 8 * NF), jnp.float32)   # nn.Linear(8*NF, 1).weight
    bl = 0.01 * jax.random.normal(keys[10], (1,), jnp.float32)

    # ---- pack every parameter into ONE lane-dense f32 array (done once) ------
    packed = jnp.zeros((PACK_ROWS, PACK_COLS), jnp.float32)
    packed = packed.at[0:VOCAB, 0:EMB].set(emb1)
    packed = packed.at[VOCAB:2 * VOCAB, 0:EMB].set(emb2)
    w_cols = [conv_w[k][:, 0, j, :].T for k in KERNEL_SIZES for j in range(k)]  # (EMB, NF) blocks
    packed = packed.at[W_ROW:W_ROW + EMB, 0:N_TAPS * NF].set(jnp.concatenate(w_cols, axis=1))
    packed = packed.at[TAIL_ROW, 0:N_BRANCH].set(
        jnp.concatenate([conv_b[k] for k in KERNEL_SIZES]))
    packed = packed.at[TAIL_ROW + 1, 0:N_AGG].set(wl[0])
    packed = packed.at[TAIL_ROW + 2, 0].set(bl[0])

    return {"packed": packed, "emb1": emb1, "emb2": emb2,
            "conv_w": conv_w, "conv_b": conv_b, "wl": wl, "bl": bl}


def reference_forward(question, params):
    """Pure-JAX reference mirroring the PyTorch forward (train=False)."""
    def branch(x, w, b, k):
        l_out = MAX_LEN - k + 1
        conv = jnp.zeros((x.shape[0], l_out, NF), jnp.float32)
        for j in range(k):
            conv = conv + jnp.einsum("ble,fe->blf", x[:, j:j + l_out, :], w[:, 0, j, :])
        conv = conv + b[None, None, :]
        return jnp.max(jnp.tanh(conv), axis=1)                    # (B, NF)

    x1 = params["emb1"][question]
    x2 = params["emb2"][question]
    pools = []
    for x in (x1, x2):
        for k in KERNEL_SIZES:
            pools.append(branch(x, params["conv_w"][k], params["conv_b"][k], k))
    agg = jnp.concatenate(pools, axis=1)                          # (B, 8*NF)
    return jax.nn.sigmoid(agg @ params["wl"].T + params["bl"])


if __name__ == "__main__":
    key = jax.random.PRNGKey(0)
    pkey, qkey = jax.random.split(key)
    params = init_params(pkey)
    question = jax.random.randint(qkey, (BATCH, MAX_LEN), 0, VOCAB, dtype=jnp.int32)

    out = cnn_classifier_forward(question, params["packed"])
    out = jax.block_until_ready(out)

    ref = reference_forward(question, params)
    assert out.shape == (BATCH, 1)
    assert jnp.allclose(out, ref, atol=1e-4, rtol=1e-4), (out, ref)
    print("KERNEL_OK")
</pallas_src>

<mosaic_0001>
module attributes {stable_mosaic.version = 11 : i64} {
  func.func @_cnn_classifier_kernel(%arg0: memref<32x1xi32, #tpu.memory_space<vmem>>, %arg1: memref<144x128xf32, #tpu.memory_space<vmem>>, %arg2: memref<2x1xf32, #tpu.memory_space<vmem>>) attributes {dimension_semantics = [], scalar_prefetch = 0 : i64, scratch_operands = 0 : i64, tpu.core_type = #tpu.core_type<tc>} {
    %c0 = arith.constant 0 : index
    %c0_0 = arith.constant 0 : index
    %0 = vector.load %arg0[%c0, %c0_0] : memref<32x1xi32, #tpu.memory_space<vmem>>, vector<32x1xi32>
    %c50_i32 = arith.constant 50 : i32
    %1 = vector.broadcast %c50_i32 : i32 to vector<32x1xi32>
    %2 = arith.addi %0, %1 : vector<32x1xi32>
    %3 = tpu.concatenate %0, %2 in 0 : vector<32x1xi32>, vector<32x1xi32> -> vector<64x1xi32>
    %4 = tpu.iota {dimensions = array<i32: 1>} : vector<64x104xi32>
    %5 = vector.broadcast %3 : vector<64x1xi32> to vector<64x104xi32>
    %6 = arith.cmpi eq, %5, %4 : vector<64x104xi32>
    %cst = arith.constant 1.000000e+00 : f32
    %cst_1 = arith.constant 0.000000e+00 : f32
    %7 = vector.broadcast %cst : f32 to vector<64x104xf32>
    %8 = vector.broadcast %cst_1 : f32 to vector<64x104xf32>
    %9 = arith.select %6, %7, %8 : vector<64x104xi1>, vector<64x104xf32>
    %c0_2 = arith.constant 0 : index
    %c0_3 = arith.constant 0 : index
    %10 = vector.load %arg1[%c0_2, %c0_3] : memref<144x128xf32, #tpu.memory_space<vmem>>, vector<104x32xf32>
    %cst_4 = arith.constant dense<0.000000e+00> : vector<64x32xf32>
    %11 = tpu.matmul %9, %10, %cst_4 {dimension_numbers = #tpu.dot_dimension_numbers<[1], [0], [0], [1], [0, 0, 1, 1], [], []>} : vector<64x104xf32>, vector<104x32xf32>, vector<64x32xf32> -> vector<64x32xf32>
    %c104 = arith.constant 104 : index
    %c0_5 = arith.constant 0 : index
    %12 = vector.load %arg1[%c104, %c0_5] : memref<144x128xf32, #tpu.memory_space<vmem>>, vector<32x88xf32>
    %cst_6 = arith.constant dense<0.000000e+00> : vector<64x88xf32>
    %13 = tpu.matmul %11, %12, %cst_6 {dimension_numbers = #tpu.dot_dimension_numbers<[1], [0], [0], [1], [0, 0, 1, 1], [], []>} : vector<64x32xf32>, vector<32x88xf32>, vector<64x88xf32> -> vector<64x88xf32>
    %c136 = arith.constant 136 : index
    %c0_7 = arith.constant 0 : index
    %14 = vector.load %arg1[%c136, %c0_7] : memref<144x128xf32, #tpu.memory_space<vmem>>, vector<8x128xf32>
    %15 = vector.extract_strided_slice %14 {offsets = [0, 0], sizes = [1, 32], strides = [1, 1]} : vector<8x128xf32> to vector<1x32xf32>
    %16 = vector.extract_strided_slice %14 {offsets = [1, 0], sizes = [1, 64], strides = [1, 1]} : vector<8x128xf32> to vector<1x64xf32>
    %17 = vector.extract_strided_slice %14 {offsets = [2, 0], sizes = [1, 1], strides = [1, 1]} : vector<8x128xf32> to vector<1x1xf32>
    %18 = tpu.iota {dimensions = array<i32: 0>} : vector<64x1xi32>
    %c16_i32 = arith.constant 16 : i32
    %c0_i32 = arith.constant 0 : i32
    %19 = arith.cmpi eq, %c16_i32, %c0_i32 : i32
    %c1_i32 = arith.constant 1 : i32
    %20 = arith.select %19, %c1_i32, %c16_i32 : i32
    %21 = vector.broadcast %20 : i32 to vector<64x1xi32>
    %22 = arith.remsi %18, %21 : vector<64x1xi32>
    %c0_i32_8 = arith.constant 0 : i32
    %23 = vector.broadcast %c0_i32_8 : i32 to vector<64x1xi32>
    %24 = arith.cmpi ne, %22, %23 : vector<64x1xi32>
    %c0_i32_9 = arith.constant 0 : i32
    %25 = vector.broadcast %c0_i32_9 : i32 to vector<64x1xi32>
    %26 = arith.cmpi slt, %22, %25 : vector<64x1xi32>
    %c0_i32_10 = arith.constant 0 : i32
    %27 = arith.cmpi slt, %20, %c0_i32_10 : i32
    %28 = vector.broadcast %27 : i1 to vector<64x1xi1>
    %29 = vector.broadcast %28 : vector<64x1xi1> to vector<64x1xi1>
    %30 = arith.xori %26, %29 : vector<64x1xi1>
    %31 = arith.andi %30, %24 : vector<64x1xi1>
    %32 = vector.broadcast %20 : i32 to vector<64x1xi32>
    %33 = arith.addi %22, %32 : vector<64x1xi32>
    %34 = arith.select %31, %33, %22 : vector<64x1xi1>, vector<64x1xi32>
    %c63_i32 = arith.constant 63 : i32
    %35 = tpu.dynamic_rotate %13 by %c63_i32 dim 0 : vector<64x88xf32>, i32 -> vector<64x88xf32>
    %c63_i32_11 = arith.constant 63 : i32
    %36 = tpu.dynamic_rotate %34 by %c63_i32_11 dim 0 : vector<64x1xi32>, i32 -> vector<64x1xi32>
    %c62_i32 = arith.constant 62 : i32
    %37 = tpu.dynamic_rotate %13 by %c62_i32 dim 0 : vector<64x88xf32>, i32 -> vector<64x88xf32>
    %c62_i32_12 = arith.constant 62 : i32
    %38 = tpu.dynamic_rotate %34 by %c62_i32_12 dim 0 : vector<64x1xi32>, i32 -> vector<64x1xi32>
    %c61_i32 = arith.constant 61 : i32
    %39 = tpu.dynamic_rotate %13 by %c61_i32 dim 0 : vector<64x88xf32>, i32 -> vector<64x88xf32>
    %c61_i32_13 = arith.constant 61 : i32
    %40 = tpu.dynamic_rotate %34 by %c61_i32_13 dim 0 : vector<64x1xi32>, i32 -> vector<64x1xi32>
    %c60_i32 = arith.constant 60 : i32
    %41 = tpu.dynamic_rotate %13 by %c60_i32 dim 0 : vector<64x88xf32>, i32 -> vector<64x88xf32>
    %c60_i32_14 = arith.constant 60 : i32
    %42 = tpu.dynamic_rotate %34 by %c60_i32_14 dim 0 : vector<64x1xi32>, i32 -> vector<64x1xi32>
    %43 = vector.extract_strided_slice %13 {offsets = [0, 0], sizes = [64, 8], strides = [1, 1]} : vector<64x88xf32> to vector<64x8xf32>
    %44 = vector.extract_strided_slice %15 {offsets = [0, 0], sizes = [1, 8], strides = [1, 1]} : vector<1x32xf32> to vector<1x8xf32>
    %45 = vector.broadcast %44 : vector<1x8xf32> to vector<64x8xf32>
    %46 = arith.addf %43, %45 : vector<64x8xf32>
    %47 = math.tanh %46 : vector<64x8xf32>
    %48 = vector.extract_strided_slice %13 {offsets = [0, 8], sizes = [64, 8], strides = [1, 1]} : vector<64x88xf32> to vector<64x8xf32>
    %49 = vector.extract_strided_slice %35 {offsets = [0, 16], sizes = [64, 8], strides = [1, 1]} : vector<64x88xf32> to vector<64x8xf32>
    %50 = arith.addf %48, %49 : vector<64x8xf32>
    %51 = arith.subi %36, %34 : vector<64x1xi32>
    %c1_i32_15 = arith.constant 1 : i32
    %52 = vector.broadcast %c1_i32_15 : i32 to vector<64x1xi32>
    %53 = arith.cmpi eq, %51, %52 : vector<64x1xi32>
    %c-1_i32 = arith.constant -1 : i32
    %54 = vector.broadcast %c-1_i32 : i32 to vector<64x1xi32>
    %55 = arith.cmpi eq, %51, %54 : vector<64x1xi32>
    %56 = arith.ori %53, %55 : vector<64x1xi1>
    %57 = vector.extract_strided_slice %15 {offsets = [0, 8], sizes = [1, 8], strides = [1, 1]} : vector<1x32xf32> to vector<1x8xf32>
    %58 = vector.broadcast %57 : vector<1x8xf32> to vector<64x8xf32>
    %59 = arith.addf %50, %58 : vector<64x8xf32>
    %60 = math.tanh %59 : vector<64x8xf32>
    %cst_16 = arith.constant 0xFF800000 : f32
    %61 = vector.shape_cast %56 : vector<64x1xi1> to vector<64x1xi1>
    %62 = vector.broadcast %61 : vector<64x1xi1> to vector<64x8xi1>
    %63 = vector.broadcast %cst_16 : f32 to vector<64x8xf32>
    %64 = arith.select %62, %60, %63 : vector<64x8xi1>, vector<64x8xf32>
    %65 = vector.extract_strided_slice %13 {offsets = [0, 24], sizes = [64, 8], strides = [1, 1]} : vector<64x88xf32> to vector<64x8xf32>
    %66 = vector.extract_strided_slice %35 {offsets = [0, 32], sizes = [64, 8], strides = [1, 1]} : vector<64x88xf32> to vector<64x8xf32>
    %67 = arith.addf %65, %66 : vector<64x8xf32>
    %68 = arith.subi %36, %34 : vector<64x1xi32>
    %c1_i32_17 = arith.constant 1 : i32
    %69 = vector.broadcast %c1_i32_17 : i32 to vector<64x1xi32>
    %70 = arith.cmpi eq, %68, %69 : vector<64x1xi32>
    %c-1_i32_18 = arith.constant -1 : i32
    %71 = vector.broadcast %c-1_i32_18 : i32 to vector<64x1xi32>
    %72 = arith.cmpi eq, %68, %71 : vector<64x1xi32>
    %73 = arith.ori %70, %72 : vector<64x1xi1>
    %74 = vector.extract_strided_slice %37 {offsets = [0, 40], sizes = [64, 8], strides = [1, 1]} : vector<64x88xf32> to vector<64x8xf32>
    %75 = arith.addf %67, %74 : vector<64x8xf32>
    %76 = arith.subi %38, %34 : vector<64x1xi32>
    %c2_i32 = arith.constant 2 : i32
    %77 = vector.broadcast %c2_i32 : i32 to vector<64x1xi32>
    %78 = arith.cmpi eq, %76, %77 : vector<64x1xi32>
    %c-2_i32 = arith.constant -2 : i32
    %79 = vector.broadcast %c-2_i32 : i32 to vector<64x1xi32>
    %80 = arith.cmpi eq, %76, %79 : vector<64x1xi32>
    %81 = arith.ori %78, %80 : vector<64x1xi1>
    %82 = arith.andi %73, %81 : vector<64x1xi1>
    %83 = vector.extract_strided_slice %15 {offsets = [0, 16], sizes = [1, 8], strides = [1, 1]} : vector<1x32xf32> to vector<1x8xf32>
    %84 = vector.broadcast %83 : vector<1x8xf32> to vector<64x8xf32>
    %85 = arith.addf %75, %84 : vector<64x8xf32>
    %86 = math.tanh %85 : vector<64x8xf32>
    %cst_19 = arith.constant 0xFF800000 : f32
    %87 = vector.shape_cast %82 : vector<64x1xi1> to vector<64x1xi1>
    %88 = vector.broadcast %87 : vector<64x1xi1> to vector<64x8xi1>
    %89 = vector.broadcast %cst_19 : f32 to vector<64x8xf32>
    %90 = arith.select %88, %86, %89 : vector<64x8xi1>, vector<64x8xf32>
    %91 = vector.extract_strided_slice %13 {offsets = [0, 48], sizes = [64, 8], strides = [1, 1]} : vector<64x88xf32> to vector<64x8xf32>
    %92 = vector.extract_strided_slice %35 {offsets = [0, 56], sizes = [64, 8], strides = [1, 1]} : vector<64x88xf32> to vector<64x8xf32>
    %93 = arith.addf %91, %92 : vector<64x8xf32>
    %94 = arith.subi %36, %34 : vector<64x1xi32>
    %c1_i32_20 = arith.constant 1 : i32
    %95 = vector.broadcast %c1_i32_20 : i32 to vector<64x1xi32>
    %96 = arith.cmpi eq, %94, %95 : vector<64x1xi32>
    %c-1_i32_21 = arith.constant -1 : i32
    %97 = vector.broadcast %c-1_i32_21 : i32 to vector<64x1xi32>
    %98 = arith.cmpi eq, %94, %97 : vector<64x1xi32>
    %99 = arith.ori %96, %98 : vector<64x1xi1>
    %100 = vector.extract_strided_slice %37 {offsets = [0, 64], sizes = [64, 8], strides = [1, 1]} : vector<64x88xf32> to vector<64x8xf32>
    %101 = arith.addf %93, %100 : vector<64x8xf32>
    %102 = arith.subi %38, %34 : vector<64x1xi32>
    %c2_i32_22 = arith.constant 2 : i32
    %103 = vector.broadcast %c2_i32_22 : i32 to vector<64x1xi32>
    %104 = arith.cmpi eq, %102, %103 : vector<64x1xi32>
    %c-2_i32_23 = arith.constant -2 : i32
    %105 = vector.broadcast %c-2_i32_23 : i32 to vector<64x1xi32>
    %106 = arith.cmpi eq, %102, %105 : vector<64x1xi32>
    %107 = arith.ori %104, %106 : vector<64x1xi1>
    %108 = arith.andi %99, %107 : vector<64x1xi1>
    %109 = vector.extract_strided_slice %39 {offsets = [0, 72], sizes = [64, 8], strides = [1, 1]} : vector<64x88xf32> to vector<64x8xf32>
    %110 = arith.addf %101, %109 : vector<64x8xf32>
    %111 = arith.subi %40, %34 : vector<64x1xi32>
    %c3_i32 = arith.constant 3 : i32
    %112 = vector.broadcast %c3_i32 : i32 to vector<64x1xi32>
    %113 = arith.cmpi eq, %111, %112 : vector<64x1xi32>
    %c-3_i32 = arith.constant -3 : i32
    %114 = vector.broadcast %c-3_i32 : i32 to vector<64x1xi32>
    %115 = arith.cmpi eq, %111, %114 : vector<64x1xi32>
    %116 = arith.ori %113, %115 : vector<64x1xi1>
    %117 = arith.andi %108, %116 : vector<64x1xi1>
    %118 = vector.extract_strided_slice %41 {offsets = [0, 80], sizes = [64, 8], strides = [1, 1]} : vector<64x88xf32> to vector<64x8xf32>
    %119 = arith.addf %110, %118 : vector<64x8xf32>
    %120 = arith.subi %42, %34 : vector<64x1xi32>
    %c4_i32 = arith.constant 4 : i32
    %121 = vector.broadcast %c4_i32 : i32 to vector<64x1xi32>
    %122 = arith.cmpi eq, %120, %121 : vector<64x1xi32>
    %c-4_i32 = arith.constant -4 : i32
    %123 = vector.broadcast %c-4_i32 : i32 to vector<64x1xi32>
    %124 = arith.cmpi eq, %120, %123 : vector<64x1xi32>
    %125 = arith.ori %122, %124 : vector<64x1xi1>
    %126 = arith.andi %117, %125 : vector<64x1xi1>
    %127 = vector.extract_strided_slice %15 {offsets = [0, 24], sizes = [1, 8], strides = [1, 1]} : vector<1x32xf32> to vector<1x8xf32>
    %128 = vector.broadcast %127 : vector<1x8xf32> to vector<64x8xf32>
    %129 = arith.addf %119, %128 : vector<64x8xf32>
    %130 = math.tanh %129 : vector<64x8xf32>
    %cst_24 = arith.constant 0xFF800000 : f32
    %131 = vector.shape_cast %126 : vector<64x1xi1> to vector<64x1xi1>
    %132 = vector.broadcast %131 : vector<64x1xi1> to vector<64x8xi1>
    %133 = vector.broadcast %cst_24 : f32 to vector<64x8xf32>
    %134 = arith.select %132, %130, %133 : vector<64x8xi1>, vector<64x8xf32>
    %135 = tpu.concatenate %47, %64, %90, %134 in 1 : vector<64x8xf32>, vector<64x8xf32>, vector<64x8xf32>, vector<64x8xf32> -> vector<64x32xf32>
    %136 = vector.extract_strided_slice %135 {offsets = [0, 0], sizes = [16, 32], strides = [1, 1]} : vector<64x32xf32> to vector<16x32xf32>
    %cst_25 = arith.constant dense<0xFF800000> : vector<32xf32>
    %137 = vector.multi_reduction <maximumf>, %136, %cst_25 [0] : vector<16x32xf32> to vector<32xf32>
    %138 = vector.shape_cast %137 : vector<32xf32> to vector<1x32xf32>
    %139 = vector.extract_strided_slice %135 {offsets = [16, 0], sizes = [16, 32], strides = [1, 1]} : vector<64x32xf32> to vector<16x32xf32>
    %cst_26 = arith.constant dense<0xFF800000> : vector<32xf32>
    %140 = vector.multi_reduction <maximumf>, %139, %cst_26 [0] : vector<16x32xf32> to vector<32xf32>
    %141 = vector.shape_cast %140 : vector<32xf32> to vector<1x32xf32>
    %142 = vector.extract_strided_slice %135 {offsets = [32, 0], sizes = [16, 32], strides = [1, 1]} : vector<64x32xf32> to vector<16x32xf32>
    %cst_27 = arith.constant dense<0xFF800000> : vector<32xf32>
    %143 = vector.multi_reduction <maximumf>, %142, %cst_27 [0] : vector<16x32xf32> to vector<32xf32>
    %144 = vector.shape_cast %143 : vector<32xf32> to vector<1x32xf32>
    %145 = vector.extract_strided_slice %135 {offsets = [48, 0], sizes = [16, 32], strides = [1, 1]} : vector<64x32xf32> to vector<16x32xf32>
    %cst_28 = arith.constant dense<0xFF800000> : vector<32xf32>
    %146 = vector.multi_reduction <maximumf>, %145, %cst_28 [0] : vector<16x32xf32> to vector<32xf32>
    %147 = vector.shape_cast %146 : vector<32xf32> to vector<1x32xf32>
    %148 = vector.extract_strided_slice %16 {offsets = [0, 0], sizes = [1, 32], strides = [1, 1]} : vector<1x64xf32> to vector<1x32xf32>
    %149 = vector.extract_strided_slice %16 {offsets = [0, 32], sizes = [1, 32], strides = [1, 1]} : vector<1x64xf32> to vector<1x32xf32>
    %150 = arith.mulf %138, %148 : vector<1x32xf32>
    %151 = arith.mulf %144, %149 : vector<1x32xf32>
    %152 = arith.addf %150, %151 : vector<1x32xf32>
    %cst_29 = arith.constant dense<0.000000e+00> : vector<1xf32>
    %153 = vector.multi_reduction <add>, %152, %cst_29 [1] : vector<1x32xf32> to vector<1xf32>
    %154 = vector.shape_cast %153 : vector<1xf32> to vector<1x1xf32>
    %155 = arith.addf %154, %17 : vector<1x1xf32>
    %156 = arith.negf %155 : vector<1x1xf32>
    %157 = math.exp %156 : vector<1x1xf32>
    %cst_30 = arith.constant 1.000000e+00 : f32
    %158 = vector.broadcast %cst_30 : f32 to vector<1x1xf32>
    %159 = arith.addf %158, %157 : vector<1x1xf32>
    %160 = arith.divf %158, %159 : vector<1x1xf32>
    %c0_31 = arith.constant 0 : index
    %c0_32 = arith.constant 0 : index
    %161 = vector.load %arg2[%c0_31, %c0_32] : memref<2x1xf32, #tpu.memory_space<vmem>>, vector<1x1xf32>
    tpu.vector_store %arg2[%c0_31, %c0_32], %160 {strides = array<i32>} : memref<2x1xf32, #tpu.memory_space<vmem>>, vector<1x1xf32>,
    %162 = arith.mulf %141, %148 : vector<1x32xf32>
    %163 = arith.mulf %147, %149 : vector<1x32xf32>
    %164 = arith.addf %162, %163 : vector<1x32xf32>
    %cst_33 = arith.constant dense<0.000000e+00> : vector<1xf32>
    %165 = vector.multi_reduction <add>, %164, %cst_33 [1] : vector<1x32xf32> to vector<1xf32>
    %166 = vector.shape_cast %165 : vector<1xf32> to vector<1x1xf32>
    %167 = arith.addf %166, %17 : vector<1x1xf32>
    %168 = arith.negf %167 : vector<1x1xf32>
    %169 = math.exp %168 : vector<1x1xf32>
    %cst_34 = arith.constant 1.000000e+00 : f32
    %170 = vector.broadcast %cst_34 : f32 to vector<1x1xf32>
    %171 = arith.addf %170, %169 : vector<1x1xf32>
    %172 = arith.divf %170, %171 : vector<1x1xf32>
    %c1 = arith.constant 1 : index
    %c0_35 = arith.constant 0 : index
    %173 = vector.load %arg2[%c1, %c0_35] : memref<2x1xf32, #tpu.memory_space<vmem>>, vector<1x1xf32>
    tpu.vector_store %arg2[%c1, %c0_35], %172 {strides = array<i32>} : memref<2x1xf32, #tpu.memory_space<vmem>>, vector<1x1xf32>,
    return
  }
}

</mosaic_0001>

<llo_original>
// kernel: cnn_classifier_forward.1
$region0: #{cnn_classifier_forward.1}
  #allocation0 [shape = 'u32[]', space=smem, size = 0x4, offset = 0x4, fixed_abs, tag = 'smem constant byte address 0x4 - core index']
  #allocation1 [shape = 'u32[144,128]{1,0:T(1,128)}', space=vmem, size = 0x12000, scoped, tag = 'internal scratch']
  %s0 = inlined_call_operand.vmem [shape: s32[32,1], index: 0, kind: input, shape index: {}]
  %s1 = inlined_call_operand.hbm [shape: f32[144,128], index: 1, kind: input, shape index: {}]
  %s2 = inlined_call_operand.vmem [shape: f32[2,1], index: 2, kind: output, shape index: {}]
  %s3 = sld [smem:[#allocation0]]
  $region22: #{cnn_classifier_forward.1} parent=0
    _
  %s5 = ssub.s32 1, %s3
  %s6 = scalar_select 0, %s5, %s3
  $region1: #{cnn_classifier_forward.1} parent=0
    #allocation2 [shape = 'u8[73728]{0}', space=vmem, size = 0x12000, scoped, tag = 'input window, operand 1, single buffered']
    #allocation3 [shape = 's32[1]{0}', space=sflag, size = 0x4, scoped, tag = 'scoped memory for cnn_classifier_forward.1']
    %7 = vsyncpa [#allocation3], 0
    // Predicated region
    $region2: #{cnn_classifier_forward.1} parent=1 // pred_check
      _
    $region3: #{cnn_classifier_forward.1} parent=1 // pred_check_branch
      %9 = sbr.rel (0) target = $region5
    $region4: #{cnn_classifier_forward.1} parent=1 // pred_region
      _
    $region5: #{cnn_classifier_forward.1} parent=1 // pred_fallthru
      _
    // Predicated region
    $region6: #{cnn_classifier_forward.1} parent=1 // pred_check
      _
    $region7: #{cnn_classifier_forward.1} parent=1 // pred_check_branch
      %11 = sbr.rel (0) target = $region9
    $region8: #{cnn_classifier_forward.1} parent=1 // pred_region
      %s13 = ssub.s32 2304, 2304
      %14 = vsyncadd [#allocation3], %s13
      %s15 = sshll.u32 [#allocation2], 4
      %s16 = int_to_ptr.vmem [resolvable:$true] %s15
      %21 = dma.hbm_to_vmem [thread:$0]  %s1, 2304, %s16, [#allocation3], 128, 128, 8
    $region9: #{cnn_classifier_forward.1} parent=1 // pred_fallthru
      _
    // Predicated region
    $region10: #{cnn_classifier_forward.1} parent=1 // pred_check
      _
    $region11: #{cnn_classifier_forward.1} parent=1 // pred_check_branch
      %23 = sbr.rel (0) target = $region13
    $region12: #{cnn_classifier_forward.1} parent=1 // pred_region
      %24 = dma.done [#allocation3], 2304
    $region13: #{cnn_classifier_forward.1} parent=1 // pred_fallthru
      _
    %v25 = vld [vmem:[%s0] sm:$0xff]
    %v26 = vld [vmem:[%s0 + $0x8] sm:$0xff]
    %v27 = vld [vmem:[%s0 + $0x10] sm:$0xff]
    %v28 = vld [vmem:[%s0 + $0x18] sm:$0xff]
    %v29 = vadd.s32 %v25, 50
    %v30 = vadd.s32 %v26, 50
    %v31 = vadd.s32 %v27, 50
    %v32 = vadd.s32 %v28, 50
    %v33 = vlaneseq
    %v34 = vand.u32 %v33, 127
    %35 = vset.pattern.permute.xlu0 0
    %36 = vperm.xlu0 %35, %v25
    %v37 = vpop.permute.xlu0 %36
    %38 = vset.pattern.permute.xlu0 0
    %39 = vperm.xlu0 %38, %v26
    %v40 = vpop.permute.xlu0 %39
    %41 = vset.pattern.permute.xlu0 0
    %42 = vperm.xlu0 %41, %v27
    %v43 = vpop.permute.xlu0 %42
    %44 = vset.pattern.permute.xlu0 0
    %45 = vperm.xlu0 %44, %v28
    %v46 = vpop.permute.xlu0 %45
    %47 = vset.pattern.permute.xlu0 0
    %48 = vperm.xlu0 %47, %v29
    %v49 = vpop.permute.xlu0 %48
    %50 = vset.pattern.permute.xlu0 0
    %51 = vperm.xlu0 %50, %v30
    %v52 = vpop.permute.xlu0 %51
    %53 = vset.pattern.permute.xlu0 0
    %54 = vperm.xlu0 %53, %v31
    %v55 = vpop.permute.xlu0 %54
    %56 = vset.pattern.permute.xlu0 0
    %57 = vperm.xlu0 %56, %v32
    %v58 = vpop.permute.xlu0 %57
    %vm59 = vcmp.eq.s32.totalorder %v37, %v34
    %vm60 = vcmp.eq.s32.totalorder %v40, %v34
    %vm61 = vcmp.eq.s32.totalorder %v43, %v34
    %vm62 = vcmp.eq.s32.totalorder %v46, %v34
    %vm63 = vcmp.eq.s32.totalorder %v49, %v34
    %vm64 = vcmp.eq.s32.totalorder %v52, %v34
    %vm65 = vcmp.eq.s32.totalorder %v55, %v34
    %vm66 = vcmp.eq.s32.totalorder %v58, %v34
    %v67 = vsel %vm59, 1.0, 0.0
    %v68 = vsel %vm60, 1.0, 0.0
    %v69 = vsel %vm61, 1.0, 0.0
    %v70 = vsel %vm62, 1.0, 0.0
    %v71 = vsel %vm63, 1.0, 0.0
    %v72 = vsel %vm64, 1.0, 0.0
    %v73 = vsel %vm65, 1.0, 0.0
    %v74 = vsel %vm66, 1.0, 0.0
    %v75 = vld [vmem:[#allocation2] sm:$0xff]
    %v76 = vld [vmem:[#allocation2 + $0x8] sm:$0xff]
    %v77 = vld [vmem:[#allocation2 + $0x10] sm:$0xff]
    %v78 = vld [vmem:[#allocation2 + $0x18] sm:$0xff]
    %v79 = vld [vmem:[#allocation2 + $0x20] sm:$0xff]
    %v80 = vld [vmem:[#allocation2 + $0x28] sm:$0xff]
    %v81 = vld [vmem:[#allocation2 + $0x30] sm:$0xff]
    %v82 = vld [vmem:[#allocation2 + $0x38] sm:$0xff]
    %v83 = vld [vmem:[#allocation2 + $0x40] sm:$0xff]
    %v84 = vld [vmem:[#allocation2 + $0x48] sm:$0xff]
    %v85 = vld [vmem:[#allocation2 + $0x50] sm:$0xff]
    %v86 = vld [vmem:[#allocation2 + $0x58] sm:$0xff]
    %v87 = vld [vmem:[#allocation2 + $0x60] sm:$0xff]
    %vm88 = vcmask 850944
    %v90 = vsel %vm88, %v67, 0
    %v93 = vsel %vm88, %v68, 0
    %v96 = vsel %vm88, %v69, 0
    %v99 = vsel %vm88, %v70, 0
    %v102 = vsel %vm88, %v71, 0
    %v105 = vsel %vm88, %v72, 0
    %v108 = vsel %vm88, %v73, 0
    %v111 = vsel %vm88, %v74, 0
    %113 = vmatprep.subr.mxu0 0.0
    %114 = vmatpush1.msra.mxu0 %v75
    %115 = vmatprep.subr.mxu0 0.0
    %116 = vmatpush1.msra.mxu0 %v76
    %117 = vmatprep.subr.mxu0 0.0
    %118 = vmatpush1.msra.mxu0 %v77
    %119 = vmatprep.subr.mxu0 0.0
    %120 = vmatpush1.msra.mxu0 %v78
    %121 = vmatprep.subr.mxu0 0.0
    %122 = vmatpush1.msra.mxu0 %v79
    %123 = vmatprep.subr.mxu0 0.0
    %124 = vmatpush1.msra.mxu0 %v80
    %125 = vmatprep.subr.mxu0 0.0
    %126 = vmatpush1.msra.mxu0 %v81
    %127 = vmatprep.subr.mxu0 0.0
    %128 = vmatpush1.msra.mxu0 %v82
    %129 = vmatprep.subr.mxu0 0.0
    %130 = vmatpush1.msra.mxu0 %v83
    %131 = vmatprep.subr.mxu0 0.0
    %132 = vmatpush1.msra.mxu0 %v84
    %133 = vmatprep.subr.mxu0 0.0
    %134 = vmatpush1.msra.mxu0 %v85
    %135 = vmatprep.subr.mxu0 0.0
    %136 = vmatpush1.msra.mxu0 %v86
    %137 = vmatprep.subr.mxu0 0.0
    %138 = vmatpush1.msra.mxu0 %v87
    %139 = vmatprep.subr.mxu0 0.0
    %140 = vmatpush1.msra.mxu0 0.0
    %141 = vmatprep.subr.mxu0 0.0
    %142 = vmatpush1.msra.mxu0 0.0
    %143 = vmatprep.subr.mxu0 0.0
    %144 = vmatpush1.msra.mxu0 0.0
    %145 = vmatprep.subr.mxu0 0.0
    %146 = vmatpush1.msra.mxu0 0.0
    %147 = vmatprep.subr.mxu0 0.0
    %148 = vmatpush1.msra.mxu0 0.0
    %149 = vmatprep.subr.mxu0 0.0
    %150 = vmatpush1.msra.mxu0 0.0
    %151 = vmatprep.subr.mxu0 0.0
    %152 = vmatpush1.msra.mxu0 0.0
    %153 = vmatprep.subr.mxu0 0.0
    %154 = vmatpush1.msra.mxu0 0.0
    %155 = vmatprep.subr.mxu0 0.0
    %156 = vmatpush1.msra.mxu0 0.0
    %157 = vmatprep.subr.mxu0 0.0
    %158 = vmatpush1.msra.mxu0 0.0
    %159 = vmatprep.subr.mxu0 0.0
    %160 = vmatpush1.msra.mxu0 0.0
    %161 = vmatprep.subr.mxu0 0.0
    %162 = vmatpush1.msra.mxu0 0.0
    %163 = vmatprep.subr.mxu0 0.0
    %164 = vmatpush1.msra.mxu0 0.0
    %165 = vmatprep.subr.mxu0 0.0
    %166 = vmatpush1.msra.mxu0 0.0
    %167 = vmatprep.subr.mxu0 0.0
    %168 = vmatpush1.msra.mxu0 0.0
    %169 = vmatprep.subr.mxu0 0.0
    %170 = vmatpush1.msra.mxu0 0.0
    %171 = vmatprep.subr.mxu0 0.0
    %172 = vmatpush1.msra.mxu0 0.0
    %173 = vmatprep.subr.mxu0 0.0
    %174 = vmatpush1.msra.mxu0 0.0
    %175 = vmatprep.subr.mxu0 0.0
    %176 = vmatpush1.msra.mxu0 0.0
    %177 = vmatprep.mubr.f32.mxu0 0.0
    %178 = vmatmul.mubr.f32.gmra.mrb[0].mxu0 %v90
    %v179 = vpop.f32.mrb[0].mxu0
    %v180 = vadd.f32 0.0, %v179
    %v181 = vpop.f32.mrb[0].mxu0
    %182 = vmatprep.mubr.f32.mxu0 0.0
    %183 = vmatmul.mubr.f32.gmra.mrb[0].mxu0 %v93
    %v184 = vpop.f32.mrb[0].mxu0
    %v185 = vadd.f32 0.0, %v184
    %v186 = vpop.f32.mrb[0].mxu0
    %187 = vmatprep.mubr.f32.mxu0 0.0
    %188 = vmatmul.mubr.f32.gmra.mrb[0].mxu0 %v96
    %v189 = vpop.f32.mrb[0].mxu0
    %v190 = vadd.f32 0.0, %v189
    %v191 = vpop.f32.mrb[0].mxu0
    %192 = vmatprep.mubr.f32.mxu0 0.0
    %193 = vmatmul.mubr.f32.gmra.mrb[0].mxu0 %v99
    %v194 = vpop.f32.mrb[0].mxu0
    %v195 = vadd.f32 0.0, %v194
    %v196 = vpop.f32.mrb[0].mxu0
    %197 = vmatprep.mubr.f32.mxu0 0.0
    %198 = vmatmul.mubr.f32.gmra.mrb[0].mxu0 %v102
    %v199 = vpop.f32.mrb[0].mxu0
    %v200 = vadd.f32 0.0, %v199
    %v201 = vpop.f32.mrb[0].mxu0
    %202 = vmatprep.mubr.f32.mxu0 0.0
    %203 = vmatmul.mubr.f32.gmra.mrb[0].mxu0 %v105
    %v204 = vpop.f32.mrb[0].mxu0
    %v205 = vadd.f32 0.0, %v204
    %v206 = vpop.f32.mrb[0].mxu0
    %207 = vmatprep.mubr.f32.mxu0 0.0
    %208 = vmatmul.mubr.f32.gmra.mrb[0].mxu0 %v108
    %v209 = vpop.f32.mrb[0].mxu0
    %v210 = vadd.f32 0.0, %v209
    %v211 = vpop.f32.mrb[0].mxu0
    %212 = vmatprep.mubr.f32.mxu0 0.0
    %213 = vmatmul.mubr.f32.gmra.mrb[0].mxu0 %v111
    %v214 = vpop.f32.mrb[0].mxu0
    %v215 = vadd.f32 0.0, %v214
    %v216 = vpop.f32.mrb[0].mxu0
    %217 = vdwg.mxu0
    %v218 = vld [vmem:[#allocation2 + $0x68] sm:$0xff]
    %v219 = vld [vmem:[#allocation2 + $0x70] sm:$0xff]
    %v220 = vld [vmem:[#allocation2 + $0x78] sm:$0xff]
    %v221 = vld [vmem:[#allocation2 + $0x80] sm:$0xff]
    %vm222 = vcmask 261120
    %v224 = vsel %vm222, %v180, 0
    %v227 = vsel %vm222, %v185, 0
    %v230 = vsel %vm222, %v190, 0
    %v233 = vsel %vm222, %v195, 0
    %v236 = vsel %vm222, %v200, 0
    %v239 = vsel %vm222, %v205, 0
    %v242 = vsel %vm222, %v210, 0
    %v245 = vsel %vm222, %v215, 0
    %247 = vmatprep.subr.mxu0 0.0
    %248 = vmatpush1.msra.mxu0 %v218
    %249 = vmatprep.subr.mxu0 0.0
    %250 = vmatpush1.msra.mxu0 %v219
    %251 = vmatprep.subr.mxu0 0.0
    %252 = vmatpush1.msra.mxu0 %v220
    %253 = vmatprep.subr.mxu0 0.0
    %254 = vmatpush1.msra.mxu0 %v221
    %255 = vmatprep.subr.mxu0 0.0
    %256 = vmatpush1.msra.mxu0 0.0
    %257 = vmatprep.subr.mxu0 0.0
    %258 = vmatpush1.msra.mxu0 0.0
    %259 = vmatprep.subr.mxu0 0.0
    %260 = vmatpush1.msra.mxu0 0.0
    %261 = vmatprep.subr.mxu0 0.0
    %262 = vmatpush1.msra.mxu0 0.0
    %263 = vmatprep.subr.mxu0 0.0
    %264 = vmatpush1.msra.mxu0 0.0
    %265 = vmatprep.subr.mxu0 0.0
    %266 = vmatpush1.msra.mxu0 0.0
    %267 = vmatprep.subr.mxu0 0.0
    %268 = vmatpush1.msra.mxu0 0.0
    %269 = vmatprep.subr.mxu0 0.0
    %270 = vmatpush1.msra.mxu0 0.0
    %271 = vmatprep.subr.mxu0 0.0
    %272 = vmatpush1.msra.mxu0 0.0
    %273 = vmatprep.subr.mxu0 0.0
    %274 = vmatpush1.msra.mxu0 0.0
    %275 = vmatprep.subr.mxu0 0.0
    %276 = vmatpush1.msra.mxu0 0.0
    %277 = vmatprep.subr.mxu0 0.0
    %278 = vmatpush1.msra.mxu0 0.0
    %279 = vmatprep.subr.mxu0 0.0
    %280 = vmatpush1.msra.mxu0 0.0
    %281 = vmatprep.subr.mxu0 0.0
    %282 = vmatpush1.msra.mxu0 0.0
    %283 = vmatprep.subr.mxu0 0.0
    %284 = vmatpush1.msra.mxu0 0.0
    %285 = vmatprep.subr.mxu0 0.0
    %286 = vmatpush1.msra.mxu0 0.0
    %287 = vmatprep.subr.mxu0 0.0
    %288 = vmatpush1.msra.mxu0 0.0
    %289 = vmatprep.subr.mxu0 0.0
    %290 = vmatpush1.msra.mxu0 0.0
    %291 = vmatprep.subr.mxu0 0.0
    %292 = vmatpush1.msra.mxu0 0.0
    %293 = vmatprep.subr.mxu0 0.0
    %294 = vmatpush1.msra.mxu0 0.0
    %295 = vmatprep.subr.mxu0 0.0
    %296 = vmatpush1.msra.mxu0 0.0
    %297 = vmatprep.subr.mxu0 0.0
    %298 = vmatpush1.msra.mxu0 0.0
    %299 = vmatprep.subr.mxu0 0.0
    %300 = vmatpush1.msra.mxu0 0.0
    %301 = vmatprep.subr.mxu0 0.0
    %302 = vmatpush1.msra.mxu0 0.0
    %303 = vmatprep.subr.mxu0 0.0
    %304 = vmatpush1.msra.mxu0 0.0
    %305 = vmatprep.subr.mxu0 0.0
    %306 = vmatpush1.msra.mxu0 0.0
    %307 = vmatprep.subr.mxu0 0.0
    %308 = vmatpush1.msra.mxu0 0.0
    %309 = vmatprep.subr.mxu0 0.0
    %310 = vmatpush1.msra.mxu0 0.0
    %311 = vmatprep.mubr.f32.mxu0 0.0
    %312 = vmatmul.mubr.f32.gmra.mrb[0].mxu0 %v224
    %v313 = vpop.f32.mrb[0].mxu0
    %v314 = vadd.f32 0.0, %v313
    %v315 = vpop.f32.mrb[0].mxu0
    %316 = vmatprep.mubr.f32.mxu0 0.0
    %317 = vmatmul.mubr.f32.gmra.mrb[0].mxu0 %v227
    %v318 = vpop.f32.mrb[0].mxu0
    %v319 = vadd.f32 0.0, %v318
    %v320 = vpop.f32.mrb[0].mxu0
    %321 = vmatprep.mubr.f32.mxu0 0.0
    %322 = vmatmul.mubr.f32.gmra.mrb[0].mxu0 %v230
    %v323 = vpop.f32.mrb[0].mxu0
    %v324 = vadd.f32 0.0, %v323
    %v325 = vpop.f32.mrb[0].mxu0
    %326 = vmatprep.mubr.f32.mxu0 0.0
    %327 = vmatmul.mubr.f32.gmra.mrb[0].mxu0 %v233
    %v328 = vpop.f32.mrb[0].mxu0
    %v329 = vadd.f32 0.0, %v328
    %v330 = vpop.f32.mrb[0].mxu0
    %331 = vmatprep.mubr.f32.mxu0 0.0
    %332 = vmatmul.mubr.f32.gmra.mrb[0].mxu0 %v236
    %v333 = vpop.f32.mrb[0].mxu0
    %v334 = vadd.f32 0.0, %v333
    %v335 = vpop.f32.mrb[0].mxu0
    %336 = vmatprep.mubr.f32.mxu0 0.0
    %337 = vmatmul.mubr.f32.gmra.mrb[0].mxu0 %v239
    %v338 = vpop.f32.mrb[0].mxu0
    %v339 = vadd.f32 0.0, %v338
    %v340 = vpop.f32.mrb[0].mxu0
    %341 = vmatprep.mubr.f32.mxu0 0.0
    %342 = vmatmul.mubr.f32.gmra.mrb[0].mxu0 %v242
    %v343 = vpop.f32.mrb[0].mxu0
    %v344 = vadd.f32 0.0, %v343
    %v345 = vpop.f32.mrb[0].mxu0
    %346 = vmatprep.mubr.f32.mxu0 0.0
    %347 = vmatmul.mubr.f32.gmra.mrb[0].mxu0 %v245
    %v348 = vpop.f32.mrb[0].mxu0
    %v349 = vadd.f32 0.0, %v348
    %v350 = vpop.f32.mrb[0].mxu0
    %351 = vdwg.mxu0
    %v352 = vld [vmem:[#allocation2 + $0x88] sm:$0xff]
    %v353 = vlaneseq
    %v354 = vshrl.u32 %v353, 7
    %v355 = vadd.s32 %v354, 8
    %v356 = vadd.s32 %v354, 16
    %v357 = vadd.s32 %v354, 24
    %v358 = vadd.s32 %v354, 32
    %v359 = vadd.s32 %v354, 40
    %v360 = vadd.s32 %v354, 48
    %v361 = vadd.s32 %v354, 56
    %vm362 = vcmp.lt.s32.totalorder %v354, 0
    %v363 = vsub.s32 0, %v354
    %v364 = vsel %vm362, %v363, %v354
    %v365 = vshrl.u32 %v364, 4
    %v366 = vand.u32 %v364, 15
    %v367 = vsub.s32 0, %v366
    %v368 = vsel %vm362, %v367, %v366
    %vm369 = vcmp.lt.s32.totalorder %v355, 0
    %v370 = vsub.s32 0, %v355
    %v371 = vsel %vm369, %v370, %v355
    %v372 = vshrl.u32 %v371, 4
    %v373 = vand.u32 %v371, 15
    %v374 = vsub.s32 0, %v373
    %v375 = vsel %vm369, %v374, %v373
    %vm376 = vcmp.lt.s32.totalorder %v356, 0
    %v377 = vsub.s32 0, %v356
    %v378 = vsel %vm376, %v377, %v356
    %v379 = vshrl.u32 %v378, 4
    %v380 = vand.u32 %v378, 15
    %v381 = vsub.s32 0, %v380
    %v382 = vsel %vm376, %v381, %v380
    %vm383 = vcmp.lt.s32.totalorder %v357, 0
    %v384 = vsub.s32 0, %v357
    %v385 = vsel %vm383, %v384, %v357
    %v386 = vshrl.u32 %v385, 4
    %v387 = vand.u32 %v385, 15
    %v388 = vsub.s32 0, %v387
    %v389 = vsel %vm383, %v388, %v387
    %vm390 = vcmp.lt.s32.totalorder %v358, 0
    %v391 = vsub.s32 0, %v358
    %v392 = vsel %vm390, %v391, %v358
    %v393 = vshrl.u32 %v392, 4
    %v394 = vand.u32 %v392, 15
    %v395 = vsub.s32 0, %v394
    %v396 = vsel %vm390, %v395, %v394
    %vm397 = vcmp.lt.s32.totalorder %v359, 0
    %v398 = vsub.s32 0, %v359
    %v399 = vsel %vm397, %v398, %v359
    %v400 = vshrl.u32 %v399, 4
    %v401 = vand.u32 %v399, 15
    %v402 = vsub.s32 0, %v401
    %v403 = vsel %vm397, %v402, %v401
    %vm404 = vcmp.lt.s32.totalorder %v360, 0
    %v405 = vsub.s32 0, %v360
    %v406 = vsel %vm404, %v405, %v360
    %v407 = vshrl.u32 %v406, 4
    %v408 = vand.u32 %v406, 15
    %v409 = vsub.s32 0, %v408
    %v410 = vsel %vm404, %v409, %v408
    %vm411 = vcmp.lt.s32.totalorder %v361, 0
    %v412 = vsub.s32 0, %v361
    %v413 = vsel %vm411, %v412, %v361
    %v414 = vshrl.u32 %v413, 4
    %v415 = vand.u32 %v413, 15
    %v416 = vsub.s32 0, %v415
    %v417 = vsel %vm411, %v416, %v415
    %vm418 = vcmp.ne.s32.totalorder %v368, 0
    %vm419 = vcmp.ne.s32.totalorder %v375, 0
    %vm420 = vcmp.ne.s32.totalorder %v382, 0
    %vm421 = vcmp.ne.s32.totalorder %v389, 0
    %vm422 = vcmp.ne.s32.totalorder %v396, 0
    %vm423 = vcmp.ne.s32.totalorder %v403, 0
    %vm424 = vcmp.ne.s32.totalorder %v410, 0
    %vm425 = vcmp.ne.s32.totalorder %v417, 0
    %vm426 = vcmp.lt.s32.totalorder %v368, 0
    %vm427 = vcmp.lt.s32.totalorder %v375, 0
    %vm428 = vcmp.lt.s32.totalorder %v382, 0
    %vm429 = vcmp.lt.s32.totalorder %v389, 0
    %vm430 = vcmp.lt.s32.totalorder %v396, 0
    %vm431 = vcmp.lt.s32.totalorder %v403, 0
    %vm432 = vcmp.lt.s32.totalorder %v410, 0
    %vm433 = vcmp.lt.s32.totalorder %v417, 0
    %vm434 = vmand %vm426, %vm418
    %vm435 = vmand %vm427, %vm419
    %vm436 = vmand %vm428, %vm420
    %vm437 = vmand %vm429, %vm421
    %vm438 = vmand %vm430, %vm422
    %vm439 = vmand %vm431, %vm423
    %vm440 = vmand %vm432, %vm424
    %vm441 = vmand %vm433, %vm425
    %v442 = vadd.s32 %v368, 16
    %v443 = vadd.s32 %v375, 16
    %v444 = vadd.s32 %v382, 16
    %v445 = vadd.s32 %v389, 16
    %v446 = vadd.s32 %v396, 16
    %v447 = vadd.s32 %v403, 16
    %v448 = vadd.s32 %v410, 16
    %v449 = vadd.s32 %v417, 16
    %v450 = vsel %vm434, %v442, %v368
    %v451 = vsel %vm435, %v443, %v375
    %v452 = vsel %vm436, %v444, %v382
    %v453 = vsel %vm437, %v445, %v389
    %v454 = vsel %vm438, %v446, %v396
    %v455 = vsel %vm439, %v447, %v403
    %v456 = vsel %vm440, %v448, %v410
    %v457 = vsel %vm441, %v449, %v417
    %v458 = vrot.slane %v314, 1
    %v459 = vrot.slane %v319, 1
    %v460 = vrot.slane %v324, 1
    %v461 = vrot.slane %v329, 1
    %v462 = vrot.slane %v334, 1
    %v463 = vrot.slane %v339, 1
    %v464 = vrot.slane %v344, 1
    %v465 = vrot.slane %v349, 1
    %vm466 = vcmp.lt.s32.totalorder %v354, 7
    %v467 = vsel %vm466, %v464, %v465
    %v468 = vsel %vm466, %v463, %v464
    %v469 = vsel %vm466, %v462, %v463
    %v470 = vsel %vm466, %v461, %v462
    %v471 = vsel %vm466, %v460, %v461
    %v472 = vsel %vm466, %v459, %v460
    %v473 = vsel %vm466, %v458, %v459
    %v474 = vsel %vm466, %v465, %v458
    %v475 = vrot.slane %v450, 1
    %v476 = vrot.slane %v451, 1
    %v477 = vrot.slane %v452, 1
    %v478 = vrot.slane %v453, 1
    %v479 = vrot.slane %v454, 1
    %v480 = vrot.slane %v455, 1
    %v481 = vrot.slane %v456, 1
    %v482 = vrot.slane %v457, 1
    %v483 = vsel %vm466, %v481, %v482
    %v484 = vsel %vm466, %v480, %v481
    %v485 = vsel %vm466, %v479, %v480
    %v486 = vsel %vm466, %v478, %v479
    %v487 = vsel %vm466, %v477, %v478
    %v488 = vsel %vm466, %v476, %v477
    %v489 = vsel %vm466, %v475, %v476
    %v490 = vsel %vm466, %v482, %v475
    %v491 = vrot.slane %v314, 2
    %v492 = vrot.slane %v319, 2
    %v493 = vrot.slane %v324, 2
    %v494 = vrot.slane %v329, 2
    %v495 = vrot.slane %v334, 2
    %v496 = vrot.slane %v339, 2
    %v497 = vrot.slane %v344, 2
    %v498 = vrot.slane %v349, 2
    %vm499 = vcmp.lt.s32.totalorder %v354, 6
    %v500 = vsel %vm499, %v497, %v498
    %v501 = vsel %vm499, %v496, %v497
    %v502 = vsel %vm499, %v495, %v496
    %v503 = vsel %vm499, %v494, %v495
    %v504 = vsel %vm499, %v493, %v494
    %v505 = vsel %vm499, %v492, %v493
    %v506 = vsel %vm499, %v491, %v492
    %v507 = vsel %vm499, %v498, %v491
    %v508 = vrot.slane %v450, 2
    %v509 = vrot.slane %v451, 2
    %v510 = vrot.slane %v452, 2
    %v511 = vrot.slane %v453, 2
    %v512 = vrot.slane %v454, 2
    %v513 = vrot.slane %v455, 2
    %v514 = vrot.slane %v456, 2
    %v515 = vrot.slane %v457, 2
    %v516 = vsel %vm499, %v514, %v515
    %v517 = vsel %vm499, %v513, %v514
    %v518 = vsel %vm499, %v512, %v513
    %v519 = vsel %vm499, %v511, %v512
    %v520 = vsel %vm499, %v510, %v511
    %v521 = vsel %vm499, %v509, %v510
    %v522 = vsel %vm499, %v508, %v509
    %v523 = vsel %vm499, %v515, %v508
    %v524 = vrot.slane %v314, 3
    %v525 = vrot.slane %v319, 3
    %v526 = vrot.slane %v324, 3
    %v527 = vrot.slane %v329, 3
    %v528 = vrot.slane %v334, 3
    %v529 = vrot.slane %v339, 3
    %v530 = vrot.slane %v344, 3
    %v531 = vrot.slane %v349, 3
    %vm532 = vcmp.lt.s32.totalorder %v354, 5
    %v533 = vsel %vm532, %v530, %v531
    %v534 = vsel %vm532, %v529, %v530
    %v535 = vsel %vm532, %v528, %v529
    %v536 = vsel %vm532, %v527, %v528
    %v537 = vsel %vm532, %v526, %v527
    %v538 = vsel %vm532, %v525, %v526
    %v539 = vsel %vm532, %v524, %v525
    %v540 = vsel %vm532, %v531, %v524
    %v541 = vrot.slane %v450, 3
    %v542 = vrot.slane %v451, 3
    %v543 = vrot.slane %v452, 3
    %v544 = vrot.slane %v453, 3
    %v545 = vrot.slane %v454, 3
    %v546 = vrot.slane %v455, 3
    %v547 = vrot.slane %v456, 3
    %v548 = vrot.slane %v457, 3
    %v549 = vsel %vm532, %v547, %v548
    %v550 = vsel %vm532, %v546, %v547
    %v551 = vsel %vm532, %v545, %v546
    %v552 = vsel %vm532, %v544, %v545
    %v553 = vsel %vm532, %v543, %v544
    %v554 = vsel %vm532, %v542, %v543
    %v555 = vsel %vm532, %v541, %v542
    %v556 = vsel %vm532, %v548, %v541
    %v557 = vrot.slane %v314, 4
    %v558 = vrot.slane %v319, 4
    %v559 = vrot.slane %v324, 4
    %v560 = vrot.slane %v329, 4
    %v561 = vrot.slane %v334, 4
    %v562 = vrot.slane %v339, 4
    %v563 = vrot.slane %v344, 4
    %v564 = vrot.slane %v349, 4
    %vm565 = vcmp.lt.s32.totalorder %v354, 4
    %v566 = vsel %vm565, %v563, %v564
    %v567 = vsel %vm565, %v562, %v563
    %v568 = vsel %vm565, %v561, %v562
    %v569 = vsel %vm565, %v560, %v561
    %v570 = vsel %vm565, %v559, %v560
    %v571 = vsel %vm565, %v558, %v559
    %v572 = vsel %vm565, %v557, %v558
    %v573 = vsel %vm565, %v564, %v557
    %v574 = vrot.slane %v450, 4
    %v575 = vrot.slane %v451, 4
    %v576 = vrot.slane %v452, 4
    %v577 = vrot.slane %v453, 4
    %v578 = vrot.slane %v454, 4
    %v579 = vrot.slane %v455, 4
    %v580 = vrot.slane %v456, 4
    %v581 = vrot.slane %v457, 4
    %v582 = vsel %vm565, %v580, %v581
    %v583 = vsel %vm565, %v579, %v580
    %v584 = vsel %vm565, %v578, %v579
    %v585 = vsel %vm565, %v577, %v578
    %v586 = vsel %vm565, %v576, %v577
    %v587 = vsel %vm565, %v575, %v576
    %v588 = vsel %vm565, %v574, %v575
    %v589 = vsel %vm565, %v581, %v574
    %v590 = vlaneseq
    %v591 = vshrl.u32 %v590, 7
    %v592 = vsub.s32 0, %v591
    %v593 = vrot.slane %v352, %v592
    %v594 = vadd.f32 %v314, %v593
    %v595 = vadd.f32 %v319, %v593
    %v596 = vadd.f32 %v324, %v593
    %v597 = vadd.f32 %v329, %v593
    %v598 = vadd.f32 %v334, %v593
    %v599 = vadd.f32 %v339, %v593
    %v600 = vadd.f32 %v344, %v593
    %v601 = vadd.f32 %v349, %v593
    %v602 = vtanh.pop %v594
    %v603 = vtanh.pop %v595
    %v604 = vtanh.pop %v596
    %v605 = vtanh.pop %v597
    %v606 = vtanh.pop %v598
    %v607 = vtanh.pop %v599
    %v608 = vtanh.pop %v600
    %v609 = vtanh.pop %v601
    %618 = vrot.lane.b32.xlu0 %v473, 120
    %v619 = vpop.permute.xlu0 %618
    %620 = vrot.lane.b32.xlu0 %v472, 120
    %v621 = vpop.permute.xlu0 %620
    %622 = vrot.lane.b32.xlu0 %v471, 120
    %v623 = vpop.permute.xlu0 %622
    %624 = vrot.lane.b32.xlu0 %v470, 120
    %v625 = vpop.permute.xlu0 %624
    %626 = vrot.lane.b32.xlu0 %v469, 120
    %v627 = vpop.permute.xlu0 %626
    %628 = vrot.lane.b32.xlu0 %v468, 120
    %v629 = vpop.permute.xlu0 %628
    %630 = vrot.lane.b32.xlu0 %v467, 120
    %v631 = vpop.permute.xlu0 %630
    %632 = vrot.lane.b32.xlu0 %v474, 120
    %v633 = vpop.permute.xlu0 %632
    %v642 = vadd.f32 %v314, %v619
    %v643 = vadd.f32 %v319, %v621
    %v644 = vadd.f32 %v324, %v623
    %v645 = vadd.f32 %v329, %v625
    %v646 = vadd.f32 %v334, %v627
    %v647 = vadd.f32 %v339, %v629
    %v648 = vadd.f32 %v344, %v631
    %v649 = vadd.f32 %v349, %v633
    %v650 = vsub.s32 %v489, %v450
    %v651 = vsub.s32 %v488, %v451
    %v652 = vsub.s32 %v487, %v452
    %v653 = vsub.s32 %v486, %v453
    %v654 = vsub.s32 %v485, %v454
    %v655 = vsub.s32 %v484, %v455
    %v656 = vsub.s32 %v483, %v456
    %v657 = vsub.s32 %v490, %v457
    %vm658 = vcmp.eq.s32.totalorder %v650, 1
    %vm659 = vcmp.eq.s32.totalorder %v651, 1
    %vm660 = vcmp.eq.s32.totalorder %v652, 1
    %vm661 = vcmp.eq.s32.totalorder %v653, 1
    %vm662 = vcmp.eq.s32.totalorder %v654, 1
    %vm663 = vcmp.eq.s32.totalorder %v655, 1
    %vm664 = vcmp.eq.s32.totalorder %v656, 1
    %vm665 = vcmp.eq.s32.totalorder %v657, 1
    %vm666 = vcmp.eq.s32.totalorder %v650, 4294967295
    %vm667 = vcmp.eq.s32.totalorder %v651, 4294967295
    %vm668 = vcmp.eq.s32.totalorder %v652, 4294967295
    %vm669 = vcmp.eq.s32.totalorder %v653, 4294967295
    %vm670 = vcmp.eq.s32.totalorder %v654, 4294967295
    %vm671 = vcmp.eq.s32.totalorder %v655, 4294967295
    %vm672 = vcmp.eq.s32.totalorder %v656, 4294967295
    %vm673 = vcmp.eq.s32.totalorder %v657, 4294967295
    %vm674 = vmor %vm658, %vm666
    %vm675 = vmor %vm659, %vm667
    %vm676 = vmor %vm660, %vm668
    %vm677 = vmor %vm661, %vm669
    %vm678 = vmor %vm662, %vm670
    %vm679 = vmor %vm663, %vm671
    %vm680 = vmor %vm664, %vm672
    %vm681 = vmor %vm665, %vm673
    %v682 = vadd.f32 %v642, %v593
    %v683 = vadd.f32 %v643, %v593
    %v684 = vadd.f32 %v644, %v593
    %v685 = vadd.f32 %v645, %v593
    %v686 = vadd.f32 %v646, %v593
    %v687 = vadd.f32 %v647, %v593
    %v688 = vadd.f32 %v648, %v593
    %v689 = vadd.f32 %v649, %v593
    %v690 = vtanh.pop %v682
    %v691 = vtanh.pop %v683
    %v692 = vtanh.pop %v684
    %v693 = vtanh.pop %v685
    %v694 = vtanh.pop %v686
    %v695 = vtanh.pop %v687
    %v696 = vtanh.pop %v688
    %v697 = vtanh.pop %v689
    %v698 = vsel %vm674, 1, 0
    %v699 = vsel %vm675, 1, 0
    %v700 = vsel %vm676, 1, 0
    %v701 = vsel %vm677, 1, 0
    %v702 = vsel %vm678, 1, 0
    %v703 = vsel %vm679, 1, 0
    %v704 = vsel %vm680, 1, 0
    %v705 = vsel %vm681, 1, 0
    %706 = vset.pattern.permute.xlu0 0
    %707 = vperm.xlu0 %706, %v698
    %v708 = vpop.permute.xlu0 %707
    %709 = vset.pattern.permute.xlu0 0
    %710 = vperm.xlu0 %709, %v699
    %v711 = vpop.permute.xlu0 %710
    %712 = vset.pattern.permute.xlu0 0
    %713 = vperm.xlu0 %712, %v700
    %v714 = vpop.permute.xlu0 %713
    %715 = vset.pattern.permute.xlu0 0
    %716 = vperm.xlu0 %715, %v701
    %v717 = vpop.permute.xlu0 %716
    %718 = vset.pattern.permute.xlu0 0
    %719 = vperm.xlu0 %718, %v702
    %v720 = vpop.permute.xlu0 %719
    %721 = vset.pattern.permute.xlu0 0
    %722 = vperm.xlu0 %721, %v703
    %v723 = vpop.permute.xlu0 %722
    %724 = vset.pattern.permute.xlu0 0
    %725 = vperm.xlu0 %724, %v704
    %v726 = vpop.permute.xlu0 %725
    %727 = vset.pattern.permute.xlu0 0
    %728 = vperm.xlu0 %727, %v705
    %v729 = vpop.permute.xlu0 %728
    %vm730 = vcmp.eq.s32.totalorder %v708, 1
    %vm731 = vcmp.eq.s32.totalorder %v711, 1
    %vm732 = vcmp.eq.s32.totalorder %v714, 1
    %vm733 = vcmp.eq.s32.totalorder %v717, 1
    %vm734 = vcmp.eq.s32.totalorder %v720, 1
    %vm735 = vcmp.eq.s32.totalorder %v723, 1
    %vm736 = vcmp.eq.s32.totalorder %v726, 1
    %vm737 = vcmp.eq.s32.totalorder %v729, 1
    %v738 = vsel %vm730, %v690, -inf
    %v739 = vsel %vm731, %v691, -inf
    %v740 = vsel %vm732, %v692, -inf
    %v741 = vsel %vm733, %v693, -inf
    %v742 = vsel %vm734, %v694, -inf
    %v743 = vsel %vm735, %v695, -inf
    %v744 = vsel %vm736, %v696, -inf
    %v745 = vsel %vm737, %v697, -inf
    %754 = vrot.lane.b32.xlu0 %v506, 112
    %v755 = vpop.permute.xlu0 %754
    %756 = vrot.lane.b32.xlu0 %v505, 112
    %v757 = vpop.permute.xlu0 %756
    %758 = vrot.lane.b32.xlu0 %v504, 112
    %v759 = vpop.permute.xlu0 %758
    %760 = vrot.lane.b32.xlu0 %v503, 112
    %v761 = vpop.permute.xlu0 %760
    %762 = vrot.lane.b32.xlu0 %v502, 112
    %v763 = vpop.permute.xlu0 %762
    %764 = vrot.lane.b32.xlu0 %v501, 112
    %v765 = vpop.permute.xlu0 %764
    %766 = vrot.lane.b32.xlu0 %v500, 112
    %v767 = vpop.permute.xlu0 %766
    %768 = vrot.lane.b32.xlu0 %v507, 112
    %v769 = vpop.permute.xlu0 %768
    %v778 = vadd.f32 %v642, %v755
    %v779 = vadd.f32 %v643, %v757
    %v780 = vadd.f32 %v644, %v759
    %v781 = vadd.f32 %v645, %v761
    %v782 = vadd.f32 %v646, %v763
    %v783 = vadd.f32 %v647, %v765
    %v784 = vadd.f32 %v648, %v767
    %v785 = vadd.f32 %v649, %v769
    %v786 = vsub.s32 %v522, %v450
    %v787 = vsub.s32 %v521, %v451
    %v788 = vsub.s32 %v520, %v452
    %v789 = vsub.s32 %v519, %v453
    %v790 = vsub.s32 %v518, %v454
    %v791 = vsub.s32 %v517, %v455
    %v792 = vsub.s32 %v516, %v456
    %v793 = vsub.s32 %v523, %v457
    %vm794 = vcmp.eq.s32.totalorder %v786, 2
    %vm795 = vcmp.eq.s32.totalorder %v787, 2
    %vm796 = vcmp.eq.s32.totalorder %v788, 2
    %vm797 = vcmp.eq.s32.totalorder %v789, 2
    %vm798 = vcmp.eq.s32.totalorder %v790, 2
    %vm799 = vcmp.eq.s32.totalorder %v791, 2
    %vm800 = vcmp.eq.s32.totalorder %v792, 2
    %vm801 = vcmp.eq.s32.totalorder %v793, 2
    %vm802 = vcmp.eq.s32.totalorder %v786, 4294967294
    %vm803 = vcmp.eq.s32.totalorder %v787, 4294967294
    %vm804 = vcmp.eq.s32.totalorder %v788, 4294967294
    %vm805 = vcmp.eq.s32.totalorder %v789, 4294967294
    %vm806 = vcmp.eq.s32.totalorder %v790, 4294967294
    %vm807 = vcmp.eq.s32.totalorder %v791, 4294967294
    %vm808 = vcmp.eq.s32.totalorder %v792, 4294967294
    %vm809 = vcmp.eq.s32.totalorder %v793, 4294967294
    %vm810 = vmor %vm794, %vm802
    %vm811 = vmor %vm795, %vm803
    %vm812 = vmor %vm796, %vm804
    %vm813 = vmor %vm797, %vm805
    %vm814 = vmor %vm798, %vm806
    %vm815 = vmor %vm799, %vm807
    %vm816 = vmor %vm800, %vm808
    %vm817 = vmor %vm801, %vm809
    %vm818 = vmand %vm674, %vm810
    %vm819 = vmand %vm675, %vm811
    %vm820 = vmand %vm676, %vm812
    %vm821 = vmand %vm677, %vm813
    %vm822 = vmand %vm678, %vm814
    %vm823 = vmand %vm679, %vm815
    %vm824 = vmand %vm680, %vm816
    %vm825 = vmand %vm681, %vm817
    %827 = vrot.lane.b32.xlu0 %v593, 8
    %v828 = vpop.permute.xlu0 %827
    %v830 = vadd.f32 %v778, %v828
    %v831 = vadd.f32 %v779, %v828
    %v832 = vadd.f32 %v780, %v828
    %v833 = vadd.f32 %v781, %v828
    %v834 = vadd.f32 %v782, %v828
    %v835 = vadd.f32 %v783, %v828
    %v836 = vadd.f32 %v784, %v828
    %v837 = vadd.f32 %v785, %v828
    %v838 = vtanh.pop %v830
    %v839 = vtanh.pop %v831
    %v840 = vtanh.pop %v832
    %v841 = vtanh.pop %v833
    %v842 = vtanh.pop %v834
    %v843 = vtanh.pop %v835
    %v844 = vtanh.pop %v836
    %v845 = vtanh.pop %v837
    %v846 = vsel %vm818, 1, 0
    %v847 = vsel %vm819, 1, 0
    %v848 = vsel %vm820, 1, 0
    %v849 = vsel %vm821, 1, 0
    %v850 = vsel %vm822, 1, 0
    %v851 = vsel %vm823, 1, 0
    %v852 = vsel %vm824, 1, 0
    %v853 = vsel %vm825, 1, 0
    %854 = vset.pattern.permute.xlu0 0
    %855 = vperm.xlu0 %854, %v846
    %v856 = vpop.permute.xlu0 %855
    %857 = vset.pattern.permute.xlu0 0
    %858 = vperm.xlu0 %857, %v847
    %v859 = vpop.permute.xlu0 %858
    %860 = vset.pattern.permute.xlu0 0
    %861 = vperm.xlu0 %860, %v848
    %v862 = vpop.permute.xlu0 %861
    %863 = vset.pattern.permute.xlu0 0
    %864 = vperm.xlu0 %863, %v849
    %v865 = vpop.permute.xlu0 %864
    %866 = vset.pattern.permute.xlu0 0
    %867 = vperm.xlu0 %866, %v850
    %v868 = vpop.permute.xlu0 %867
    %869 = vset.pattern.permute.xlu0 0
    %870 = vperm.xlu0 %869, %v851
    %v871 = vpop.permute.xlu0 %870
    %872 = vset.pattern.permute.xlu0 0
    %873 = vperm.xlu0 %872, %v852
    %v874 = vpop.permute.xlu0 %873
    %875 = vset.pattern.permute.xlu0 0
    %876 = vperm.xlu0 %875, %v853
    %v877 = vpop.permute.xlu0 %876
    %vm878 = vcmp.eq.s32.totalorder %v856, 1
    %vm879 = vcmp.eq.s32.totalorder %v859, 1
    %vm880 = vcmp.eq.s32.totalorder %v862, 1
    %vm881 = vcmp.eq.s32.totalorder %v865, 1
    %vm882 = vcmp.eq.s32.totalorder %v868, 1
    %vm883 = vcmp.eq.s32.totalorder %v871, 1
    %vm884 = vcmp.eq.s32.totalorder %v874, 1
    %vm885 = vcmp.eq.s32.totalorder %v877, 1
    %v886 = vsel %vm878, %v838, -inf
    %v887 = vsel %vm879, %v839, -inf
    %v888 = vsel %vm880, %v840, -inf
    %v889 = vsel %vm881, %v841, -inf
    %v890 = vsel %vm882, %v842, -inf
    %v891 = vsel %vm883, %v843, -inf
    %v892 = vsel %vm884, %v844, -inf
    %v893 = vsel %vm885, %v845, -inf
    %902 = vrot.lane.b32.xlu0 %v539, 104
    %v903 = vpop.permute.xlu0 %902
    %904 = vrot.lane.b32.xlu0 %v538, 104
    %v905 = vpop.permute.xlu0 %904
    %906 = vrot.lane.b32.xlu0 %v537, 104
    %v907 = vpop.permute.xlu0 %906
    %908 = vrot.lane.b32.xlu0 %v536, 104
    %v909 = vpop.permute.xlu0 %908
    %910 = vrot.lane.b32.xlu0 %v535, 104
    %v911 = vpop.permute.xlu0 %910
    %912 = vrot.lane.b32.xlu0 %v534, 104
    %v913 = vpop.permute.xlu0 %912
    %914 = vrot.lane.b32.xlu0 %v533, 104
    %v915 = vpop.permute.xlu0 %914
    %916 = vrot.lane.b32.xlu0 %v540, 104
    %v917 = vpop.permute.xlu0 %916
    %v926 = vadd.f32 %v778, %v903
    %v927 = vadd.f32 %v779, %v905
    %v928 = vadd.f32 %v780, %v907
    %v929 = vadd.f32 %v781, %v909
    %v930 = vadd.f32 %v782, %v911
    %v931 = vadd.f32 %v783, %v913
    %v932 = vadd.f32 %v784, %v915
    %v933 = vadd.f32 %v785, %v917
    %v934 = vsub.s32 %v555, %v450
    %v935 = vsub.s32 %v554, %v451
    %v936 = vsub.s32 %v553, %v452
    %v937 = vsub.s32 %v552, %v453
    %v938 = vsub.s32 %v551, %v454
    %v939 = vsub.s32 %v550, %v455
    %v940 = vsub.s32 %v549, %v456
    %v941 = vsub.s32 %v556, %v457
    %vm942 = vcmp.eq.s32.totalorder %v934, 3
    %vm943 = vcmp.eq.s32.totalorder %v935, 3
    %vm944 = vcmp.eq.s32.totalorder %v936, 3
    %vm945 = vcmp.eq.s32.totalorder %v937, 3
    %vm946 = vcmp.eq.s32.totalorder %v938, 3
    %vm947 = vcmp.eq.s32.totalorder %v939, 3
    %vm948 = vcmp.eq.s32.totalorder %v940, 3
    %vm949 = vcmp.eq.s32.totalorder %v941, 3
    %vm950 = vcmp.eq.s32.totalorder %v934, 4294967293
    %vm951 = vcmp.eq.s32.totalorder %v935, 4294967293
    %vm952 = vcmp.eq.s32.totalorder %v936, 4294967293
    %vm953 = vcmp.eq.s32.totalorder %v937, 4294967293
    %vm954 = vcmp.eq.s32.totalorder %v938, 4294967293
    %vm955 = vcmp.eq.s32.totalorder %v939, 4294967293
    %vm956 = vcmp.eq.s32.totalorder %v940, 4294967293
    %vm957 = vcmp.eq.s32.totalorder %v941, 4294967293
    %vm958 = vmor %vm942, %vm950
    %vm959 = vmor %vm943, %vm951
    %vm960 = vmor %vm944, %vm952
    %vm961 = vmor %vm945, %vm953
    %vm962 = vmor %vm946, %vm954
    %vm963 = vmor %vm947, %vm955
    %vm964 = vmor %vm948, %vm956
    %vm965 = vmor %vm949, %vm957
    %vm966 = vmand %vm818, %vm958
    %vm967 = vmand %vm819, %vm959
    %vm968 = vmand %vm820, %vm960
    %vm969 = vmand %vm821, %vm961
    %vm970 = vmand %vm822, %vm962
    %vm971 = vmand %vm823, %vm963
    %vm972 = vmand %vm824, %vm964
    %vm973 = vmand %vm825, %vm965
    %982 = vrot.lane.b32.xlu0 %v572, 96
    %v983 = vpop.permute.xlu0 %982
    %984 = vrot.lane.b32.xlu0 %v571, 96
    %v985 = vpop.permute.xlu0 %984
    %986 = vrot.lane.b32.xlu0 %v570, 96
    %v987 = vpop.permute.xlu0 %986
    %988 = vrot.lane.b32.xlu0 %v569, 96
    %v989 = vpop.permute.xlu0 %988
    %990 = vrot.lane.b32.xlu0 %v568, 96
    %v991 = vpop.permute.xlu0 %990
    %992 = vrot.lane.b32.xlu0 %v567, 96
    %v993 = vpop.permute.xlu0 %992
    %994 = vrot.lane.b32.xlu0 %v566, 96
    %v995 = vpop.permute.xlu0 %994
    %996 = vrot.lane.b32.xlu0 %v573, 96
    %v997 = vpop.permute.xlu0 %996
    %v1006 = vadd.f32 %v926, %v983
    %v1007 = vadd.f32 %v927, %v985
    %v1008 = vadd.f32 %v928, %v987
    %v1009 = vadd.f32 %v929, %v989
    %v1010 = vadd.f32 %v930, %v991
    %v1011 = vadd.f32 %v931, %v993
    %v1012 = vadd.f32 %v932, %v995
    %v1013 = vadd.f32 %v933, %v997
    %v1014 = vsub.s32 %v588, %v450
    %v1015 = vsub.s32 %v587, %v451
    %v1016 = vsub.s32 %v586, %v452
    %v1017 = vsub.s32 %v585, %v453
    %v1018 = vsub.s32 %v584, %v454
    %v1019 = vsub.s32 %v583, %v455
    %v1020 = vsub.s32 %v582, %v456
    %v1021 = vsub.s32 %v589, %v457
    %vm1022 = vcmp.eq.s32.totalorder %v1014, 4
    %vm1023 = vcmp.eq.s32.totalorder %v1015, 4
    %vm1024 = vcmp.eq.s32.totalorder %v1016, 4
    %vm1025 = vcmp.eq.s32.totalorder %v1017, 4
    %vm1026 = vcmp.eq.s32.totalorder %v1018, 4
    %vm1027 = vcmp.eq.s32.totalorder %v1019, 4
    %vm1028 = vcmp.eq.s32.totalorder %v1020, 4
    %vm1029 = vcmp.eq.s32.totalorder %v1021, 4
    %vm1030 = vcmp.eq.s32.totalorder %v1014, 4294967292
    %vm1031 = vcmp.eq.s32.totalorder %v1015, 4294967292
    %vm1032 = vcmp.eq.s32.totalorder %v1016, 4294967292
    %vm1033 = vcmp.eq.s32.totalorder %v1017, 4294967292
    %vm1034 = vcmp.eq.s32.totalorder %v1018, 4294967292
    %vm1035 = vcmp.eq.s32.totalorder %v1019, 4294967292
    %vm1036 = vcmp.eq.s32.totalorder %v1020, 4294967292
    %vm1037 = vcmp.eq.s32.totalorder %v1021, 4294967292
    %vm1038 = vmor %vm1022, %vm1030
    %vm1039 = vmor %vm1023, %vm1031
    %vm1040 = vmor %vm1024, %vm1032
    %vm1041 = vmor %vm1025, %vm1033
    %vm1042 = vmor %vm1026, %vm1034
    %vm1043 = vmor %vm1027, %vm1035
    %vm1044 = vmor %vm1028, %vm1036
    %vm1045 = vmor %vm1029, %vm1037
    %vm1046 = vmand %vm966, %vm1038
    %vm1047 = vmand %vm967, %vm1039
    %vm1048 = vmand %vm968, %vm1040
    %vm1049 = vmand %vm969, %vm1041
    %vm1050 = vmand %vm970, %vm1042
    %vm1051 = vmand %vm971, %vm1043
    %vm1052 = vmand %vm972, %vm1044
    %vm1053 = vmand %vm973, %vm1045
    %1054 = vrot.lane.b32.xlu0 %v593, 24
    %v1055 = vpop.permute.xlu0 %1054
    %v1057 = vadd.f32 %v1006, %v1055
    %v1058 = vadd.f32 %v1007, %v1055
    %v1059 = vadd.f32 %v1008, %v1055
    %v1060 = vadd.f32 %v1009, %v1055
    %v1061 = vadd.f32 %v1010, %v1055
    %v1062 = vadd.f32 %v1011, %v1055
    %v1063 = vadd.f32 %v1012, %v1055
    %v1064 = vadd.f32 %v1013, %v1055
    %v1065 = vtanh.pop %v1057
    %v1066 = vtanh.pop %v1058
    %v1067 = vtanh.pop %v1059
    %v1068 = vtanh.pop %v1060
    %v1069 = vtanh.pop %v1061
    %v1070 = vtanh.pop %v1062
    %v1071 = vtanh.pop %v1063
    %v1072 = vtanh.pop %v1064
    %v1073 = vsel %vm1046, 1, 0
    %v1074 = vsel %vm1047, 1, 0
    %v1075 = vsel %vm1048, 1, 0
    %v1076 = vsel %vm1049, 1, 0
    %v1077 = vsel %vm1050, 1, 0
    %v1078 = vsel %vm1051, 1, 0
    %v1079 = vsel %vm1052, 1, 0
    %v1080 = vsel %vm1053, 1, 0
    %1081 = vset.pattern.permute.xlu0 0
    %1082 = vperm.xlu0 %1081, %v1073
    %v1083 = vpop.permute.xlu0 %1082
    %1084 = vset.pattern.permute.xlu0 0
    %1085 = vperm.xlu0 %1084, %v1074
    %v1086 = vpop.permute.xlu0 %1085
    %1087 = vset.pattern.permute.xlu0 0
    %1088 = vperm.xlu0 %1087, %v1075
    %v1089 = vpop.permute.xlu0 %1088
    %1090 = vset.pattern.permute.xlu0 0
    %1091 = vperm.xlu0 %1090, %v1076
    %v1092 = vpop.permute.xlu0 %1091
    %1093 = vset.pattern.permute.xlu0 0
    %1094 = vperm.xlu0 %1093, %v1077
    %v1095 = vpop.permute.xlu0 %1094
    %1096 = vset.pattern.permute.xlu0 0
    %1097 = vperm.xlu0 %1096, %v1078
    %v1098 = vpop.permute.xlu0 %1097
    %1099 = vset.pattern.permute.xlu0 0
    %1100 = vperm.xlu0 %1099, %v1079
    %v1101 = vpop.permute.xlu0 %1100
    %1102 = vset.pattern.permute.xlu0 0
    %1103 = vperm.xlu0 %1102, %v1080
    %v1104 = vpop.permute.xlu0 %1103
    %vm1105 = vcmp.eq.s32.totalorder %v1083, 1
    %vm1106 = vcmp.eq.s32.totalorder %v1086, 1
    %vm1107 = vcmp.eq.s32.totalorder %v1089, 1
    %vm1108 = vcmp.eq.s32.totalorder %v1092, 1
    %vm1109 = vcmp.eq.s32.totalorder %v1095, 1
    %vm1110 = vcmp.eq.s32.totalorder %v1098, 1
    %vm1111 = vcmp.eq.s32.totalorder %v1101, 1
    %vm1112 = vcmp.eq.s32.totalorder %v1104, 1
    %v1113 = vsel %vm1105, %v1065, -inf
    %v1114 = vsel %vm1106, %v1066, -inf
    %v1115 = vsel %vm1107, %v1067, -inf
    %v1116 = vsel %vm1108, %v1068, -inf
    %v1117 = vsel %vm1109, %v1069, -inf
    %v1118 = vsel %vm1110, %v1070, -inf
    %v1119 = vsel %vm1111, %v1071, -inf
    %v1120 = vsel %vm1112, %v1072, -inf
    %1129 = vrot.lane.b32.xlu0 %v886, 120
    %v1130 = vpop.permute.xlu0 %1129
    %1131 = vrot.lane.b32.xlu0 %v887, 120
    %v1132 = vpop.permute.xlu0 %1131
    %1133 = vrot.lane.b32.xlu0 %v888, 120
    %v1134 = vpop.permute.xlu0 %1133
    %1135 = vrot.lane.b32.xlu0 %v889, 120
    %v1136 = vpop.permute.xlu0 %1135
    %1137 = vrot.lane.b32.xlu0 %v890, 120
    %v1138 = vpop.permute.xlu0 %1137
    %1139 = vrot.lane.b32.xlu0 %v891, 120
    %v1140 = vpop.permute.xlu0 %1139
    %1141 = vrot.lane.b32.xlu0 %v892, 120
    %v1142 = vpop.permute.xlu0 %1141
    %1143 = vrot.lane.b32.xlu0 %v893, 120
    %v1144 = vpop.permute.xlu0 %1143
    %1161 = vrot.lane.b32.xlu0 %v1113, 104
    %v1162 = vpop.permute.xlu0 %1161
    %1163 = vrot.lane.b32.xlu0 %v1114, 104
    %v1164 = vpop.permute.xlu0 %1163
    %1165 = vrot.lane.b32.xlu0 %v1115, 104
    %v1166 = vpop.permute.xlu0 %1165
    %1167 = vrot.lane.b32.xlu0 %v1116, 104
    %v1168 = vpop.permute.xlu0 %1167
    %1169 = vrot.lane.b32.xlu0 %v1117, 104
    %v1170 = vpop.permute.xlu0 %1169
    %1171 = vrot.lane.b32.xlu0 %v1118, 104
    %v1172 = vpop.permute.xlu0 %1171
    %1173 = vrot.lane.b32.xlu0 %v1119, 104
    %v1174 = vpop.permute.xlu0 %1173
    %1175 = vrot.lane.b32.xlu0 %v1120, 104
    %v1176 = vpop.permute.xlu0 %1175
    %vm1185 = vcmask 64512
    %v1186 = vsel %vm1185, %v602, %v738
    %v1187 = vsel %vm1185, %v603, %v739
    %v1188 = vsel %vm1185, %v604, %v740
    %v1189 = vsel %vm1185, %v605, %v741
    %v1190 = vsel %vm1185, %v606, %v742
    %v1191 = vsel %vm1185, %v607, %v743
    %v1192 = vsel %vm1185, %v608, %v744
    %v1193 = vsel %vm1185, %v609, %v745
    %vm1194 = vcmask 130048
    %v1195 = vsel %vm1194, %v1186, %v1130
    %v1196 = vsel %vm1194, %v1187, %v1132
    %v1197 = vsel %vm1194, %v1188, %v1134
    %v1198 = vsel %vm1194, %v1189, %v1136
    %v1199 = vsel %vm1194, %v1190, %v1138
    %v1200 = vsel %vm1194, %v1191, %v1140
    %v1201 = vsel %vm1194, %v1192, %v1142
    %v1202 = vsel %vm1194, %v1193, %v1144
    %vm1203 = vcmask 195584
    %v1204 = vsel %vm1203, %v1195, %v1162
    %v1205 = vsel %vm1203, %v1196, %v1164
    %v1206 = vsel %vm1203, %v1197, %v1166
    %v1207 = vsel %vm1203, %v1198, %v1168
    %v1208 = vsel %vm1203, %v1199, %v1170
    %v1209 = vsel %vm1203, %v1200, %v1172
    %v1210 = vsel %vm1203, %v1201, %v1174
    %v1211 = vsel %vm1203, %v1202, %v1176
    %v1212 = vsel %vm222, %v1204, -inf
    %v1213 = vsel %vm222, %v1205, -inf
    %v1214 = vmax.f32 %v1212, %v1213
    %v1215 = vrot.slane %v1214, 4
    %v1216 = vmax.f32 %v1214, %v1215
    %v1217 = vrot.slane %v1216, 2
    %v1218 = vmax.f32 %v1216, %v1217
    %v1219 = vrot.slane %v1218, 1
    %v1220 = vmax.f32 %v1218, %v1219
    %v1221 = vsel %vm222, %v1206, -inf
    %v1222 = vsel %vm222, %v1207, -inf
    %v1223 = vmax.f32 %v1221, %v1222
    %v1224 = vrot.slane %v1223, 4
    %v1225 = vmax.f32 %v1223, %v1224
    %v1226 = vrot.slane %v1225, 2
    %v1227 = vmax.f32 %v1225, %v1226
    %v1228 = vrot.slane %v1227, 1
    %v1229 = vmax.f32 %v1227, %v1228
    %v1230 = vsel %vm222, %v1208, -inf
    %v1231 = vsel %vm222, %v1209, -inf
    %v1232 = vmax.f32 %v1230, %v1231
    %v1233 = vrot.slane %v1232, 4
    %v1234 = vmax.f32 %v1232, %v1233
    %v1235 = vrot.slane %v1234, 2
    %v1236 = vmax.f32 %v1234, %v1235
    %v1237 = vrot.slane %v1236, 1
    %v1238 = vmax.f32 %v1236, %v1237
    %v1239 = vsel %vm222, %v1210, -inf
    %v1240 = vsel %vm222, %v1211, -inf
    %v1241 = vmax.f32 %v1239, %v1240
    %v1242 = vrot.slane %v1241, 4
    %v1243 = vmax.f32 %v1241, %v1242
    %v1244 = vrot.slane %v1243, 2
    %v1245 = vmax.f32 %v1243, %v1244
    %v1246 = vrot.slane %v1245, 1
    %v1247 = vmax.f32 %v1245, %v1246
    %v1248 = vmul.f32 %v1220, %v352
    %v1250 = vrot.slane %v352, 1
    %1251 = vrot.lane.b32.xlu0 %v1250, 96
    %v1252 = vpop.permute.xlu0 %1251
    %v1254 = vmul.f32 %v1238, %v1252
    %v1256 = vrot.slane %v1254, 7
    %v1258 = vadd.f32 %v1248, %v1256
    %vm1259 = vcmask 254977
    %v1260 = vsel %vm1259, %v1258, 0.0
    %1261 = vadd.xlane.f32.xlu0 %v1260
    %v1262 = vpop.xlane.xlu0 %1261
    %v1264 = vadd.f32 %v1262, %v1250
    %v1265 = vxor.u32 %v1264, 2147483648
    %v1266 = vmul.f32 %v1265, 1.442695
    %v1267 = vpow.pop %v1266
    %v1268 = vadd.f32 %v1267, 1.0
    %v1269 = vrcp.pop %v1268
    %v1270 = vmul.f32 1.0, %v1269
    %vm1271 = vcmask 1025
    %1272 = vst.msk [vmem:[%s2 - $0x1] sm:$0x2] %vm1271, %v1270
    %v1273 = vmul.f32 %v1229, %v352
    %v1274 = vmul.f32 %v1247, %v1252
    %v1276 = vrot.slane %v1274, 7
    %v1278 = vadd.f32 %v1273, %v1276
    %v1279 = vsel %vm1259, %v1278, 0.0
    %1280 = vadd.xlane.f32.xlu0 %v1279
    %v1281 = vpop.xlane.xlu0 %1280
    %v1282 = vadd.f32 %v1281, %v1250
    %v1283 = vxor.u32 %v1282, 2147483648
    %v1284 = vmul.f32 %v1283, 1.442695
    %v1285 = vpow.pop %v1284
    %v1286 = vadd.f32 %v1285, 1.0
    %v1287 = vrcp.pop %v1286
    %v1288 = vmul.f32 1.0, %v1287
    %1289 = vst.msk [vmem:[%s2] sm:$0x2] %vm1271, %v1288
    // Predicated region
    $region14: #{cnn_classifier_forward.1} parent=1 // pred_check
      _
    $region15: #{cnn_classifier_forward.1} parent=1 // pred_check_branch
      %1291 = sbr.rel (0) target = $region17
    $region16: #{cnn_classifier_forward.1} parent=1 // pred_region
      _
    $region17: #{cnn_classifier_forward.1} parent=1 // pred_fallthru
      _
    // Predicated region
    $region18: #{cnn_classifier_forward.1} parent=1 // pred_check
      _
    $region19: #{cnn_classifier_forward.1} parent=1 // pred_check_branch
      %1293 = sbr.rel (0) target = $region21
    $region20: #{cnn_classifier_forward.1} parent=1 // pred_region
      _
    $region21: #{cnn_classifier_forward.1} parent=1 // pred_fallthru
      _
    %1294 = vsyncpa [#allocation3], 1

</llo_original>
